<compile_context>
chip_gen: v6e
topology: v6e:2x2x1
jax: 0.10.0
libtpu: 0.0.40
codegen_flags: <defaults>
</compile_context>

<pallas_src>
import functools

import jax
import jax.numpy as jnp
from jax.experimental import pallas as pl
from jax.experimental.pallas import tpu as pltpu


EPS = 1e-5
LANE_CHOICES = (1024, 512, 256, 128)    # lane-dense slab widths (multiples of 128)
BLOCK_BYTES_TARGET = 4 * 1024 * 1024    # ~4 MiB streaming blocks (amortizes per-step cost)


def _round_up(a, b):
    return (a + b - 1) // b * b


def _vmem_capacity_bytes():
    """Per-core VMEM capacity; conservative fallback (v7x) if the query is unavailable."""
    try:
        return int(pltpu.get_tpu_info().vmem_capacity_bytes)
    except Exception:
        return 64 * 1024 * 1024


def _to_slab(x):
    """Flatten x into a lane-dense (rows, lanes) slab with no copy when possible.

    Returns (slab, lanes, rows, padded). `padded` is True only for the rare sizes that
    are not a multiple of 128 (pad+unpad fallback).
    """
    total = x.size
    for lanes in LANE_CHOICES:
        if total % lanes == 0:
            return x.reshape(total // lanes, lanes), lanes, total // lanes, False
    # TODO(synk): sizes that are not a multiple of 128 still take a pad + unpad copy;
    # handle the flat tail in-kernel if this path ever becomes hot.
    lanes = LANE_CHOICES[0]
    padded_total = _round_up(total, lanes)
    flat = jnp.pad(x.reshape(-1), (0, padded_total - total))
    return flat.reshape(padded_total // lanes, lanes), lanes, padded_total // lanes, True


# ---------------------------------------------------------------------------
# Kernels
# ---------------------------------------------------------------------------
def _fused_kernel(ema_ref, x_ref, y_ref, ema_out_ref, xbuf, acc,
                  *, beta, inv_count, block_rows, rows, need_mask):
    """Two-phase fused EMANorm (grid = (2, n_tiles), sequential).

    Phase 0: stream x tiles in, accumulate sum(x^2) into `acc`, stash tiles in `xbuf`.
    Phase 1: compute EMA/gain once per step (cheap) and stream y tiles out of `xbuf`.
    Total HBM traffic ~ 2N.
    """
    p = pl.program_id(0)        # phase
    t = pl.program_id(1)        # tile index within the slab

    @pl.when((p == 0) & (t == 0))
    def _init():
        acc[...] = jnp.zeros_like(acc)

    @pl.when(p == 0)
    def _reduce_and_stash():
        xf = x_ref[...].astype(jnp.float32)
        sq = xf * xf
        if need_mask:   # edge tile: rows beyond the array are unspecified -> mask them out
            ridx = t * block_rows + jax.lax.broadcasted_iota(jnp.int32, sq.shape, 0)
            sq = jnp.where(ridx < rows, sq, 0.0)
        # Sublane-grouped sum: pure VPU adds, no per-tile cross-lane XLU reduce.
        acc[...] += jnp.sum(sq.reshape(-1, 8, sq.shape[-1]), axis=0)
        start = pl.multiple_of(t * block_rows, block_rows)
        xbuf[pl.ds(start, block_rows), :] = x_ref[...]
        ema_out_ref[0, 0] = ema_ref[0, 0]

    @pl.when(p == 1)
    def _scale():
        sumsq = jnp.sum(acc[...])
        cur = sumsq * inv_count                 # mean over the REAL element count
        ema_old = ema_ref[0, 0]
        lerped = cur + beta * (ema_old - cur)   # torch.lerp(cur, ema, beta)
        new_ema = jnp.where(jnp.isnan(cur), ema_old, lerped)
        gain = jax.lax.rsqrt(new_ema + EPS)
        start = pl.multiple_of(t * block_rows, block_rows)
        y_ref[...] = (xbuf[pl.ds(start, block_rows), :] * gain).astype(y_ref.dtype)
        ema_out_ref[0, 0] = new_ema


def _sumsq_kernel(x_ref, partial_ref, *, block_rows, rows, tiles_per_split, need_mask):
    """Pass 1: accumulate sum(x^2) into a per-split (8, lanes) f32 accumulator.

    Grid = (n_splits, tiles_per_split); split axis is 'parallel', reduction axis last.
    Out-of-range tiles (odd tile counts) and edge rows are masked via a row iota.
    """
    t = pl.program_id(1)

    @pl.when(t == 0)
    def _init():
        partial_ref[...] = jnp.zeros_like(partial_ref)

    xf = x_ref[...].astype(jnp.float32)
    sq = xf * xf
    if need_mask:
        gtile = pl.program_id(0) * tiles_per_split + t
        ridx = gtile * block_rows + jax.lax.broadcasted_iota(jnp.int32, sq.shape, 0)
        sq = jnp.where(ridx < rows, sq, 0.0)
    partial_ref[...] += jnp.sum(sq.reshape(-1, 8, sq.shape[-1]), axis=0)


def _scale_epilogue_kernel(ema_ref, partial_ref, x_ref, y_ref, ema_out_ref,
                           *, beta, inv_count):
    """Pass 2 (also the eval path): y = x * rsqrt(lerp(mean(x^2), ema, beta) + eps).

    The scalar epilogue (sum of the resident partial, lerp, rsqrt) is recomputed each
    grid step: it is tiny, hidden under the block DMA, and keeps every step independent
    so the grid axis can stay 'parallel' (megacore-safe).
    """
    sumsq = jnp.sum(partial_ref[...])
    cur = sumsq * inv_count
    ema_old = ema_ref[0, 0]
    lerped = cur + beta * (ema_old - cur)
    new_ema = jnp.where(jnp.isnan(cur), ema_old, lerped)
    gain = jax.lax.rsqrt(new_ema + EPS)
    y_ref[...] = (x_ref[...] * gain).astype(y_ref.dtype)
    ema_out_ref[0, 0] = new_ema


# ---------------------------------------------------------------------------
# Wrapper
# ---------------------------------------------------------------------------
def ema_norm_forward(x, magnitude_ema, beta, training=True, *,
                     block_rows=None, force_two_pass=False):
    """Pallas implementation of EMANorm.forward.

    Returns (y, new_magnitude_ema); y.shape == x.shape, y.dtype == x.dtype.
    """
    orig_shape = x.shape
    total = x.size
    beta = float(beta)
    ema_scalar = jnp.asarray(magnitude_ema, jnp.float32).reshape(())

    if total == 0:
        # torch: mean of empty is NaN -> EMA not updated; scale is still applied.
        gain = jax.lax.rsqrt(ema_scalar + EPS)
        return (x * gain).astype(x.dtype), ema_scalar

    ema_f = ema_scalar.reshape(1, 1)
    itemsize = jnp.dtype(x.dtype).itemsize
    sub_mult = 8 if itemsize >= 4 else (16 if itemsize == 2 else 32)

    x2d, lanes, rows, padded = _to_slab(x)
    slab_bytes = rows * lanes * itemsize
    vmem_cap = _vmem_capacity_bytes()

    def pick_block_rows(target_bytes):
        br = block_rows if block_rows is not None else max(
            sub_mult, target_bytes // (lanes * itemsize))
        br = min(br, _round_up(rows, sub_mult))
        return max(sub_mult, _round_up(br, sub_mult))

    def vmem_limit(brows, with_slab):
        blk_io = brows * lanes * itemsize
        blk_f32 = brows * lanes * 4
        need = 4 * blk_io + 4 * blk_f32 + (8 << 20) + (slab_bytes if with_slab else 0)
        return int(max(16 << 20, min(vmem_cap - (8 << 20), need)))

    def unslab(y2d):
        if padded:
            return y2d.reshape(-1)[:total].reshape(orig_shape)
        return y2d.reshape(orig_shape)

    ema_out_shape = jax.ShapeDtypeStruct((1, 1), jnp.float32)

    # Generation-aware fused threshold: slab resident in VMEM up to 1/4 of capacity
    # (~16 MiB on v7x, ~32 MiB on v5e/v6e).
    use_fused = training and not force_two_pass and slab_bytes <= vmem_cap // 4

    if use_fused:
        # ------------- fused two-phase single pass (2N HBM traffic) -------------
        brows = pick_block_rows(BLOCK_BYTES_TARGET // 2)      # ~2 MiB pipelined tiles
        n_tiles = pl.cdiv(rows, brows)
        need_mask = (rows % brows) != 0
        y2d, ema_out = pl.pallas_call(
            functools.partial(_fused_kernel, beta=beta, inv_count=1.0 / total,
                              block_rows=brows, rows=rows, need_mask=need_mask),
            out_shape=(jax.ShapeDtypeStruct((rows, lanes), x.dtype), ema_out_shape),
            grid=(2, n_tiles),
            in_specs=[pl.BlockSpec(memory_space=pltpu.MemorySpace.SMEM),
                      # phase 0 streams tile t; phase 1 pins block 0 (resident, unused)
                      pl.BlockSpec((brows, lanes), lambda p, t: ((1 - p) * t, 0))],
            out_specs=(
                # phase 0 keeps block 0 resident (never leaves garbage in HBM);
                # phase 1 writes block t.
                pl.BlockSpec((brows, lanes), lambda p, t: (p * t, 0)),
                pl.BlockSpec(memory_space=pltpu.MemorySpace.SMEM)),
            scratch_shapes=[pltpu.VMEM((n_tiles * brows, lanes), x.dtype),   # x slab
                            pltpu.VMEM((8, lanes), jnp.float32)],            # sum(x^2) acc
            compiler_params=pltpu.CompilerParams(
                dimension_semantics=("arbitrary", "arbitrary"),
                vmem_limit_bytes=vmem_limit(brows, with_slab=True)),
        )(ema_f, x2d)
        return unslab(y2d), ema_out.reshape(())

    # ---------------- streaming path (two passes when training) ----------------
    brows = pick_block_rows(BLOCK_BYTES_TARGET)               # ~4 MiB streaming blocks
    n_tiles = pl.cdiv(rows, brows)
    limit = vmem_limit(brows, with_slab=False)

    if training:
        n_splits = 2 if n_tiles >= 2 else 1
        tiles_per_split = pl.cdiv(n_tiles, n_splits)
        grid_tiles = n_splits * tiles_per_split
        need_mask = (rows % brows != 0) or (grid_tiles > n_tiles)
        last_block = n_tiles - 1

        def x_map(s, t):
            # Clamp padded steps (odd tile counts) onto a real block; the kernel's row
            # mask zeroes their contribution.
            return (jnp.minimum(s * tiles_per_split + t, last_block), 0)

        partial = pl.pallas_call(
            functools.partial(_sumsq_kernel, block_rows=brows, rows=rows,
                              tiles_per_split=tiles_per_split, need_mask=need_mask),
            out_shape=jax.ShapeDtypeStruct((n_splits * 8, lanes), jnp.float32),
            grid=(n_splits, tiles_per_split),
            in_specs=[pl.BlockSpec((brows, lanes), x_map)],
            out_specs=pl.BlockSpec((8, lanes), lambda s, t: (s, 0)),
            compiler_params=pltpu.CompilerParams(
                # TODO(synk): on v7x, CORE_PARALLEL on the split axis would guarantee
                # 2-TensorCore sharding of the reduction; kept "parallel" for portability.
                dimension_semantics=("parallel", "arbitrary"),
                vmem_limit_bytes=limit),
        )(x2d)
        beta_eff, inv_count = beta, 1.0 / total
    else:
        # Eval: lerp with beta=1 leaves the EMA unchanged; single streaming pass.
        partial = jnp.zeros((8, lanes), jnp.float32)
        beta_eff, inv_count = 1.0, 0.0

    y2d, ema_out = pl.pallas_call(
        functools.partial(_scale_epilogue_kernel, beta=beta_eff, inv_count=inv_count),
        out_shape=(jax.ShapeDtypeStruct((rows, lanes), x.dtype), ema_out_shape),
        grid=(n_tiles,),
        in_specs=[pl.BlockSpec(memory_space=pltpu.MemorySpace.SMEM),
                  pl.BlockSpec(partial.shape, lambda i: (0, 0)),      # resident partial
                  pl.BlockSpec((brows, lanes), lambda i: (i, 0))],
        out_specs=(pl.BlockSpec((brows, lanes), lambda i: (i, 0)),
                   pl.BlockSpec(memory_space=pltpu.MemorySpace.SMEM)),
        compiler_params=pltpu.CompilerParams(
            dimension_semantics=("parallel",),
            vmem_limit_bytes=limit),
    )(ema_f, partial, x2d)
    return unslab(y2d), ema_out.reshape(())


# ---------------------------------------------------------------------------
# Reference + tests
# ---------------------------------------------------------------------------
def _reference(x, magnitude_ema, beta, training=True):
    ema = jnp.asarray(magnitude_ema, jnp.float32)
    if training:
        cur = jnp.mean(x.astype(jnp.float32) ** 2)
        lerped = cur + beta * (ema - cur)
        ema = jnp.where(jnp.isnan(cur), ema, lerped)
    gain = jax.lax.rsqrt(ema + 1e-5)
    return (x * gain).astype(x.dtype), ema


def _check(name, got, want, rtol, atol):
    assert jnp.allclose(got, want, rtol=rtol, atol=atol), f"{name} mismatch"


if __name__ == "__main__":
    beta = 0.999
    ema0 = jnp.ones((), dtype=jnp.float32)           # buffer init: torch.ones([])
    k0, k1, k2, k3 = jax.random.split(jax.random.PRNGKey(0), 4)

    # 1) small NCHW activation (module-consistent): fused two-phase path, no padding
    x1 = jax.random.normal(k0, (2, 4, 16, 16), dtype=jnp.float32)
    fwd = jax.jit(functools.partial(ema_norm_forward, beta=beta, training=True))
    y1, e1 = fwd(x1, ema0)
    jax.block_until_ready((y1, e1))
    y1r, e1r = _reference(x1, ema0, beta, training=True)
    _check("fused y", y1, y1r, 1e-5, 1e-5)
    _check("fused ema", e1, e1r, 1e-5, 1e-6)

    # 2) two-pass streaming path with an odd tile count (split clamp + in-kernel mask)
    x2 = jax.random.normal(k1, (2, 3, 64, 64), dtype=jnp.float32)   # 24 rows of 1024
    fwd2 = jax.jit(functools.partial(ema_norm_forward, beta=beta, training=True,
                                     block_rows=8, force_two_pass=True))
    y2, e2 = fwd2(x2, ema0)
    jax.block_until_ready((y2, e2))
    y2r, e2r = _reference(x2, ema0, beta, training=True)
    _check("two-pass y", y2, y2r, 1e-5, 1e-5)
    _check("two-pass ema", e2, e2r, 1e-5, 1e-6)

    # 3) ragged rows (125 rows of 128 lanes): fused path with edge-row masking, no padding
    x3 = jax.random.normal(k2, (2, 5, 40, 40), dtype=jnp.float32)   # 16000 elements
    y3, e3 = fwd(x3, ema0)
    jax.block_until_ready((y3, e3))
    y3r, e3r = _reference(x3, ema0, beta, training=True)
    _check("ragged y", y3, y3r, 1e-5, 1e-5)
    _check("ragged ema", e3, e3r, 1e-5, 1e-6)

    # 4) eval mode (single streaming pass, EMA unchanged)
    x4 = jax.random.normal(k3, (2, 4, 16, 16), dtype=jnp.float32)
    fwd_eval = jax.jit(functools.partial(ema_norm_forward, beta=beta, training=False))
    y4, e4 = fwd_eval(x4, ema0)
    jax.block_until_ready((y4, e4))
    y4r, e4r = _reference(x4, ema0, beta, training=False)
    _check("eval y", y4, y4r, 1e-5, 1e-5)
    _check("eval ema", e4, e4r, 1e-6, 1e-6)

    print("KERNEL_OK")
</pallas_src>

<mosaic_0001>
module attributes {stable_mosaic.version = 11 : i64} {
  func.func @_fused_kernel(%arg0: i32, %arg1: i32, %arg2: memref<1x1xf32, #tpu.memory_space<smem>>, %arg3: memref<8x1024xf32, #tpu.memory_space<vmem>>, %arg4: memref<8x1024xf32, #tpu.memory_space<vmem>>, %arg5: memref<1x1xf32, #tpu.memory_space<smem>>, %arg6: memref<8x1024xf32, #tpu.memory_space<vmem>>, %arg7: memref<8x1024xf32, #tpu.memory_space<vmem>>) attributes {dimension_semantics = [#tpu.dimension_semantics<arbitrary>, #tpu.dimension_semantics<arbitrary>], iteration_bounds = array<i64: 2, 1>, scalar_prefetch = 0 : i64, scratch_operands = 2 : i64, tpu.core_type = #tpu.core_type<tc>, window_params = [{transform_indices = @transform_0, window_bounds = array<i64: 1, 1>}, {transform_indices = @transform_1, window_bounds = array<i64: 8, 1024>}, {transform_indices = @transform_2, window_bounds = array<i64: 8, 1024>}, {transform_indices = @transform_3, window_bounds = array<i64: 1, 1>}]} {
    %c0_i32 = arith.constant 0 : i32
    %0 = arith.cmpi eq, %arg0, %c0_i32 : i32
    %c0_i32_0 = arith.constant 0 : i32
    %1 = arith.cmpi eq, %arg1, %c0_i32_0 : i32
    %2 = arith.andi %0, %1 : i1
    %3 = arith.extui %2 : i1 to i32
    %c0_i32_1 = arith.constant 0 : i32
    %4 = arith.cmpi ne, %3, %c0_i32_1 : i32
    scf.if %4 {
      %cst = arith.constant 0.000000e+00 : f32
      %11 = vector.broadcast %cst : f32 to vector<8x1024xf32>
      %c0 = arith.constant 0 : index
      %c0_5 = arith.constant 0 : index
      %12 = vector.load %arg7[%c0, %c0_5] : memref<8x1024xf32, #tpu.memory_space<vmem>>, vector<8x1024xf32>
      tpu.vector_store %arg7[%c0, %c0_5], %11 {strides = array<i32>} : memref<8x1024xf32, #tpu.memory_space<vmem>>, vector<8x1024xf32>,
    } else {
    }
    %c0_i32_2 = arith.constant 0 : i32
    %5 = arith.cmpi eq, %arg0, %c0_i32_2 : i32
    %6 = arith.extui %5 : i1 to i32
    %c0_i32_3 = arith.constant 0 : i32
    %7 = arith.cmpi ne, %6, %c0_i32_3 : i32
    scf.if %7 {
      %c0 = arith.constant 0 : index
      %c0_5 = arith.constant 0 : index
      %11 = vector.load %arg3[%c0, %c0_5] : memref<8x1024xf32, #tpu.memory_space<vmem>>, vector<8x1024xf32>
      %12 = arith.mulf %11, %11 : vector<8x1024xf32>
      %c8_i32 = arith.constant 8 : i32
      %13 = arith.muli %arg1, %c8_i32 : i32
      %14 = tpu.iota {dimensions = array<i32: 0>} : vector<8x1024xi32>
      %15 = vector.broadcast %13 : i32 to vector<8x1024xi32>
      %16 = arith.addi %15, %14 : vector<8x1024xi32>
      %c2_i32 = arith.constant 2 : i32
      %17 = vector.broadcast %c2_i32 : i32 to vector<8x1024xi32>
      %18 = arith.cmpi slt, %16, %17 : vector<8x1024xi32>
      %cst = arith.constant 0.000000e+00 : f32
      %19 = vector.broadcast %cst : f32 to vector<8x1024xf32>
      %20 = arith.select %18, %12, %19 : vector<8x1024xi1>, vector<8x1024xf32>
      %c0_6 = arith.constant 0 : index
      %c0_7 = arith.constant 0 : index
      %21 = vector.load %arg7[%c0_6, %c0_7] : memref<8x1024xf32, #tpu.memory_space<vmem>>, vector<8x1024xf32>
      %22 = vector.shape_cast %20 : vector<8x1024xf32> to vector<1x8x1024xf32>
      %cst_8 = arith.constant dense<0.000000e+00> : vector<8x1024xf32>
      %23 = vector.multi_reduction <add>, %22, %cst_8 [0] : vector<1x8x1024xf32> to vector<8x1024xf32>
      %24 = arith.addf %21, %23 : vector<8x1024xf32>
      %c0_9 = arith.constant 0 : index
      %c0_10 = arith.constant 0 : index
      %25 = vector.load %arg7[%c0_9, %c0_10] : memref<8x1024xf32, #tpu.memory_space<vmem>>, vector<8x1024xf32>
      tpu.vector_store %arg7[%c0_9, %c0_10], %24 {strides = array<i32>} : memref<8x1024xf32, #tpu.memory_space<vmem>>, vector<8x1024xf32>,
      %c8_i32_11 = arith.constant 8 : i32
      %26 = arith.muli %arg1, %c8_i32_11 : i32
      %27 = tpu.assume_multiple %26, 8 : i32
      %c0_12 = arith.constant 0 : index
      %c0_13 = arith.constant 0 : index
      %28 = vector.load %arg3[%c0_12, %c0_13] : memref<8x1024xf32, #tpu.memory_space<vmem>>, vector<8x1024xf32>
      %29 = arith.index_cast %27 : i32 to index
      %c0_14 = arith.constant 0 : index
      %30 = vector.load %arg6[%29, %c0_14] : memref<8x1024xf32, #tpu.memory_space<vmem>>, vector<8x1024xf32>
      tpu.vector_store %arg6[%29, %c0_14], %28 {strides = array<i32>} : memref<8x1024xf32, #tpu.memory_space<vmem>>, vector<8x1024xf32>,
      %c0_15 = arith.constant 0 : index
      %c0_16 = arith.constant 0 : index
      %31 = memref.load %arg2[%c0_15, %c0_16] : memref<1x1xf32, #tpu.memory_space<smem>>
      %c0_17 = arith.constant 0 : index
      %c0_18 = arith.constant 0 : index
      %32 = memref.load %arg5[%c0_17, %c0_18] : memref<1x1xf32, #tpu.memory_space<smem>>
      memref.store %31, %arg5[%c0_17, %c0_18] : memref<1x1xf32, #tpu.memory_space<smem>>
    } else {
    }
    %c1_i32 = arith.constant 1 : i32
    %8 = arith.cmpi eq, %arg0, %c1_i32 : i32
    %9 = arith.extui %8 : i1 to i32
    %c0_i32_4 = arith.constant 0 : i32
    %10 = arith.cmpi ne, %9, %c0_i32_4 : i32
    scf.if %10 {
      %c0 = arith.constant 0 : index
      %c0_5 = arith.constant 0 : index
      %11 = vector.load %arg7[%c0, %c0_5] : memref<8x1024xf32, #tpu.memory_space<vmem>>, vector<8x1024xf32>
      %12 = vector.shape_cast %11 : vector<8x1024xf32> to vector<1x8x1024xf32>
      %cst = arith.constant dense<0.000000e+00> : vector<1xf32>
      %13 = vector.multi_reduction <add>, %12, %cst [1, 2] : vector<1x8x1024xf32> to vector<1xf32>
      %14 = vector.shape_cast %13 : vector<1xf32> to vector<1x1x1xf32>
      %15 = vector.extract %14[0, 0, 0] : f32 from vector<1x1x1xf32>
      %cst_6 = arith.constant 4.8828125E-4 : f32
      %16 = arith.mulf %15, %cst_6 : f32
      %c0_7 = arith.constant 0 : index
      %c0_8 = arith.constant 0 : index
      %17 = memref.load %arg2[%c0_7, %c0_8] : memref<1x1xf32, #tpu.memory_space<smem>>
      %18 = arith.subf %17, %16 : f32
      %cst_9 = arith.constant 9.990000e-01 : f32
      %19 = arith.mulf %cst_9, %18 : f32
      %20 = arith.addf %16, %19 : f32
      %21 = arith.cmpf one, %16, %16 : f32
      %22 = arith.select %21, %17, %20 : f32
      %cst_10 = arith.constant 9.99999974E-6 : f32
      %23 = arith.addf %22, %cst_10 : f32
      %24 = math.rsqrt %23 : f32
      %c8_i32 = arith.constant 8 : i32
      %25 = arith.muli %arg1, %c8_i32 : i32
      %26 = tpu.assume_multiple %25, 8 : i32
      %27 = arith.index_cast %26 : i32 to index
      %c0_11 = arith.constant 0 : index
      %28 = vector.load %arg6[%27, %c0_11] : memref<8x1024xf32, #tpu.memory_space<vmem>>, vector<8x1024xf32>
      %29 = vector.broadcast %24 : f32 to vector<8x1024xf32>
      %30 = arith.mulf %28, %29 : vector<8x1024xf32>
      %c0_12 = arith.constant 0 : index
      %c0_13 = arith.constant 0 : index
      %31 = vector.load %arg4[%c0_12, %c0_13] : memref<8x1024xf32, #tpu.memory_space<vmem>>, vector<8x1024xf32>
      tpu.vector_store %arg4[%c0_12, %c0_13], %30 {strides = array<i32>} : memref<8x1024xf32, #tpu.memory_space<vmem>>, vector<8x1024xf32>,
      %c0_14 = arith.constant 0 : index
      %c0_15 = arith.constant 0 : index
      %32 = memref.load %arg5[%c0_14, %c0_15] : memref<1x1xf32, #tpu.memory_space<smem>>
      memref.store %22, %arg5[%c0_14, %c0_15] : memref<1x1xf32, #tpu.memory_space<smem>>
    } else {
    }
    return
  }
  func.func @transform_0(%arg0: i32, %arg1: i32) -> (i32, i32) {
    %c0_i32 = arith.constant 0 : i32
    %c0_i32_0 = arith.constant 0 : i32
    %c0_i32_1 = arith.constant 0 : i32
    return %c0_i32, %c0_i32_0 : i32, i32
  }
  func.func @transform_1(%arg0: i32, %arg1: i32) -> (i32, i32) {
    %c1_i32 = arith.constant 1 : i32
    %0 = arith.subi %c1_i32, %arg0 : i32
    %1 = arith.muli %0, %arg1 : i32
    %c0_i32 = arith.constant 0 : i32
    %c0_i32_0 = arith.constant 0 : i32
    return %1, %c0_i32 : i32, i32
  }
  func.func @transform_2(%arg0: i32, %arg1: i32) -> (i32, i32) {
    %0 = arith.muli %arg0, %arg1 : i32
    %c0_i32 = arith.constant 0 : i32
    %c0_i32_0 = arith.constant 0 : i32
    return %0, %c0_i32 : i32, i32
  }
  func.func @transform_3(%arg0: i32, %arg1: i32) -> (i32, i32) {
    %c0_i32 = arith.constant 0 : i32
    %c0_i32_0 = arith.constant 0 : i32
    %c0_i32_1 = arith.constant 0 : i32
    return %c0_i32, %c0_i32_0 : i32, i32
  }
}

</mosaic_0001>

<llo_original>
// kernel: ema_norm_forward.1
$region0: #{ema_norm_forward.1}
  #allocation0 [shape = 'u32[]', space=smem, size = 0x4, offset = 0x4, fixed_abs, tag = 'smem constant byte address 0x4 - core index']
  #allocation1 [shape = 'u32[144,128]{1,0:T(1,128)}', space=vmem, size = 0x12000, scoped, tag = 'internal scratch']
  #allocation2 [shape = 'f32[8,1024]{1,0:T(8,128)}', space=vmem, size = 0x8000, scoped, tag = 'scratch operand']
  #allocation3 [shape = 'f32[8,1024]{1,0:T(8,128)}', space=vmem, size = 0x8000, scoped, tag = 'scratch operand']
  #allocation4 [shape = 'f32[1,1]{1,0:T(1,128)S(6)}', space=smem, size = 0x200, scoped, tag = 'scoped memory for ema_norm_forward.1']
  %s0 = inlined_call_operand.<no memory space> [shape: f32[1,1], index: 0, kind: input, shape index: {}]
  %s1 = inlined_call_operand.vmem [shape: f32[2,1024], index: 1, kind: input, shape index: {}]
  %s2 = inlined_call_operand.vmem [shape: f32[2,1024], index: 2, kind: output, shape index: {0}]
  %s3 = inlined_call_operand.hbm [shape: f32[1,1], index: 3, kind: output, shape index: {1}]
  %4 = xla_tuple %s2, %s3
  %s5 = sld [smem:[#allocation0]]
  $region80: #{ema_norm_forward.1} parent=0
    _
  %s7 = ssub.s32 1, %s5
  %s8 = scalar_select 0, %s7, %s5
  %9 = sst [smem:[#allocation4]] %s0
  $region1: #{ema_norm_forward.1} parent=0
    #allocation5 [shape = 'u8[65536]{0}', space=vmem, size = 0x10000, scoped, tag = 'output window, operand 0']
    #allocation6 [shape = 'u8[512]{0}', space=smem, size = 0x200, scoped, tag = 'output window, operand 1, single buffered']
    #allocation7 [shape = 's32[2]{0}', space=sflag, size = 0x8, scoped, tag = 'scoped memory for ema_norm_forward.1']
    %10 = vsyncpa [#allocation7], 0
    loop: start=0, step=1, limit=4
    $region2: #{ema_norm_forward.1} parent=1 // loop_pre_header
      _
    $region3: #{ema_norm_forward.1} parent=1 // loop_header
      %s12 = sphi 0, %s16
      %p13 = scmp.ge.s32.totalorder %s12, 4
      %s19 = sphi 0, %s31
      %s20 = sphi 0, %s27
      %s21 = sphi 0, %s19
      %s22 = sphi 0, %s20
      %s23 = sphi 0, %s21
      %s24 = sphi 0, %s22
      %s32 = sphi 0, %s32
      %s34 = sphi 0, %s32
      %s35 = sphi 0, %s34
      %s49 = sphi 0, %s35
      %s59 = sphi 0, %s61
      %s62 = sphi 0, %s59
      %s63 = sphi 0, %s62
      %s79 = sphi 0, %s63
      %s87 = sphi 0, %s89
      %s90 = sphi 0, %s87
      %s91 = sphi 0, %s90
      %s107 = sphi 0, %s91
      %s111 = sphi 0, %s111
      %s113 = sphi 0, %s111
      %s114 = sphi 0, %s113
      %s128 = sphi 0, %s114
    $region4: #{ema_norm_forward.1} parent=1 // loop_header_branch
      %15 = sbr.rel (%p13) target = $region8
    $region5: #{ema_norm_forward.1} parent=1 // loop_body
      %s17 = ssub.s32 %s12, 1
      %s18 = ssub.s32 %s12, 2
      %s25 = sadd.s32 1, %s20
      %p26 = scmp.ge.s32.totalorder %s25, 1
      %s27 = scalar_select %p26, 0, %s25
      %s28 = sadd.s32 1, %s19
      %s29 = scalar_select %p26, %s28, %s19
      %p30 = scmp.ge.s32.totalorder %s29, 2
      %s31 = scalar_select %p30, 0, %s29
      %s33 = sadd.s32 %s32, 1
      %p36 = scmp.eq.s32.totalorder %s12, 1
      %p37 = scmp.ne.s32.totalorder %s32, %s34
      %p38 = scmp.eq.s32.totalorder %s12, 0
      %p39 = por %p37, %p38
      %p40 = scmp.ne.s32.totalorder %s32, %s34
      %p41 = scmp.eq.s32.totalorder %s17, 1
      %p42 = por %p40, %p41
      %p43 = scmp.ne.s32.totalorder %s34, %s35
      %p44 = scmp.eq.s32.totalorder %s17, 0
      %p45 = por %p43, %p44
      %p46 = scmp.ne.s32.totalorder %s34, %s35
      %p47 = scmp.eq.s32.totalorder %s18, 1
      %p48 = por %p46, %p47
      %p50 = scmp.ne.s32.totalorder %s35, %s49
      %p51 = scmp.eq.s32.totalorder %s18, 0
      %p52 = por %p50, %p51
      %s53 = ssub.s32 1, %s19
      %s54 = smul.u32 %s53, %s20
      %s55 = ssub.s32 1, %s31
      %s56 = smul.u32 %s55, %s27
      %s57 = ssub.s32 %s54, %s56
      %p58 = scmp.eq.s32.totalorder %s57, 0
      %s60 = sadd.s32 %s59, 1
      %s61 = scalar_select %p58, %s59, %s60
      %p64 = pneg %p58
      %p65 = scmp.eq.s32.totalorder %s12, 1
      %p66 = por %p64, %p65
      %p67 = scmp.ne.s32.totalorder %s59, %s62
      %p68 = scmp.eq.s32.totalorder %s12, 0
      %p69 = por %p67, %p68
      %p70 = scmp.ne.s32.totalorder %s59, %s62
      %p71 = scmp.eq.s32.totalorder %s17, 1
      %p72 = por %p70, %p71
      %p73 = scmp.ne.s32.totalorder %s62, %s63
      %p74 = scmp.eq.s32.totalorder %s17, 0
      %p75 = por %p73, %p74
      %p76 = scmp.ne.s32.totalorder %s62, %s63
      %p77 = scmp.eq.s32.totalorder %s18, 1
      %p78 = por %p76, %p77
      %p80 = scmp.ne.s32.totalorder %s63, %s79
      %p81 = scmp.eq.s32.totalorder %s18, 0
      %p82 = por %p80, %p81
      %s83 = smul.u32 %s19, %s20
      %s84 = smul.u32 %s31, %s27
      %s85 = ssub.s32 %s83, %s84
      %p86 = scmp.eq.s32.totalorder %s85, 0
      %s88 = sadd.s32 %s87, 1
      %s89 = scalar_select %p86, %s87, %s88
      %p92 = pneg %p86
      %p93 = scmp.eq.s32.totalorder %s12, 1
      %p94 = por %p92, %p93
      %p95 = scmp.ne.s32.totalorder %s87, %s90
      %p96 = scmp.eq.s32.totalorder %s12, 0
      %p97 = por %p95, %p96
      %p98 = scmp.ne.s32.totalorder %s87, %s90
      %p99 = scmp.eq.s32.totalorder %s17, 1
      %p100 = por %p98, %p99
      %p101 = scmp.ne.s32.totalorder %s90, %s91
      %p102 = scmp.eq.s32.totalorder %s17, 0
      %p103 = por %p101, %p102
      %p104 = scmp.ne.s32.totalorder %s90, %s91
      %p105 = scmp.eq.s32.totalorder %s18, 1
      %p106 = por %p104, %p105
      %p108 = scmp.ne.s32.totalorder %s91, %s107
      %p109 = scmp.eq.s32.totalorder %s18, 0
      %p110 = por %p108, %p109
      %s112 = sadd.s32 %s111, 1
      %p115 = scmp.eq.s32.totalorder %s12, 1
      %p116 = scmp.ne.s32.totalorder %s111, %s113
      %p117 = scmp.eq.s32.totalorder %s12, 0
      %p118 = por %p116, %p117
      %p119 = scmp.ne.s32.totalorder %s111, %s113
      %p120 = scmp.eq.s32.totalorder %s17, 1
      %p121 = por %p119, %p120
      %p122 = scmp.ne.s32.totalorder %s113, %s114
      %p123 = scmp.eq.s32.totalorder %s17, 0
      %p124 = por %p122, %p123
      %p125 = scmp.ne.s32.totalorder %s113, %s114
      %p126 = scmp.eq.s32.totalorder %s18, 1
      %p127 = por %p125, %p126
      %p129 = scmp.ne.s32.totalorder %s114, %s128
      %p130 = scmp.eq.s32.totalorder %s18, 0
      %p131 = por %p129, %p130
      %p132 = scmp.le.s32.totalorder 1, %s12
      %p133 = scmp.lt.s32.totalorder %s12, 3
      %p134 = pnand %p132, %p133
      %p135 = pneg %p134
      // Predicated region
      $region9: #{ema_norm_forward.1} parent=5 // pred_check
        _
      $region10: #{ema_norm_forward.1} parent=5 // pred_check_branch
        %137 = sbr.rel (%p134) target = $region12
      $region11: #{ema_norm_forward.1} parent=5 // pred_region
        %s138 = ssub.s32 %s12, 1
        // Predicated region
        $region13: #{ema_norm_forward.1} parent=11 // pred_check
          %p139 = pneg %p45
        $region14: #{ema_norm_forward.1} parent=11 // pred_check_branch
          %141 = sbr.rel (%p139) target = $region16
        $region15: #{ema_norm_forward.1} parent=11 // pred_region
          _
        $region16: #{ema_norm_forward.1} parent=11 // pred_fallthru
          _
      $region12: #{ema_norm_forward.1} parent=5 // pred_fallthru
        _
      %p142 = scmp.lt.s32.totalorder %s12, 2
      // Predicated region
      $region17: #{ema_norm_forward.1} parent=5 // pred_check
        %p143 = pneg %p142
      $region18: #{ema_norm_forward.1} parent=5 // pred_check_branch
        %145 = sbr.rel (%p143) target = $region20
      $region19: #{ema_norm_forward.1} parent=5 // pred_region
        // Predicated region
        $region21: #{ema_norm_forward.1} parent=19 // pred_check
          %p146 = pneg %p69
        $region22: #{ema_norm_forward.1} parent=19 // pred_check_branch
          %148 = sbr.rel (%p146) target = $region24
        $region23: #{ema_norm_forward.1} parent=19 // pred_region
          %s149 = ssub.s32 1, %s19
          %s150 = smul.u32 %s149, %s20
          %s151 = smul.u32 4, %s150
          %s152 = ssub.s32 1, %s151
          %s153 = smul.u32 32, %s152
          %s154 = smul.u32 %s153, 8
          %p155 = scmp.lt.s32.totalorder %s151, 0
          %s156 = scalar_select %p155, %s151, 0
          %s157 = smul.addr %s156, 8
          %s158 = smul.addr %s157, 2
          %s159 = scalar_lea.vmem %s1, %s158
          %s160 = ssub.s32 1, %s19
          %s161 = smul.u32 %s160, %s20
          %s162 = smul.u32 4, %s161
          %s163 = ssub.s32 1, %s162
          %s164 = smul.u32 32, %s163
          %s165 = smul.u32 %s164, 8
        $region24: #{ema_norm_forward.1} parent=19 // pred_fallthru
          _
      $region20: #{ema_norm_forward.1} parent=5 // pred_fallthru
        _
      %p166 = scmp.le.s32.totalorder 1, %s12
      %p167 = scmp.lt.s32.totalorder %s12, 3
      %p168 = pnand %p166, %p167
      %p169 = pneg %p168
      // Predicated region
      $region25: #{ema_norm_forward.1} parent=5 // pred_check
        _
      $region26: #{ema_norm_forward.1} parent=5 // pred_check_branch
        %171 = sbr.rel (%p168) target = $region28
      $region27: #{ema_norm_forward.1} parent=5 // pred_region
        %s172 = ssub.s32 %s12, 1
        %p173 = pneg %p45
        %p174 = pneg %p42
        %s175 = ssub.s32 1, %s21
        %s176 = smul.u32 %s175, %s22
        %s177 = smul.u32 4, %s176
        %s178 = ssub.s32 1, %s177
        %s179 = smul.u32 32, %s178
        %s180 = smul.u32 %s179, 8
        %p181 = scmp.lt.s32.totalorder %s177, 0
        %s182 = scalar_select %p181, %s177, 0
        %s183 = smul.addr %s182, 8
        %s184 = smul.addr %s183, 2
        %s185 = scalar_lea.vmem %s1, %s184
        %p186 = pneg %p75
        %p187 = pneg %p72
        %p188 = pneg %p103
        %p189 = pneg %p100
        %s190 = sand.u32 %s90, 1
        %s191 = sand.u32 %s90, 1
        %s192 = smul.addr %s191, 64
        %s193 = scalar_lea.vmem [#allocation5], %s192
        %p194 = pneg %p124
        %p195 = pneg %p121
        %s196 = ssub.s32 1, %s21
        %s197 = smul.u32 %s196, %s22
        %s198 = smul.u32 4, %s197
        %s199 = ssub.s32 1, %s198
        %s200 = smul.u32 32, %s199
        %s201 = smul.u32 %s200, 8
        %p202 = scmp.lt.s32.totalorder %s198, 0
        %s203 = scalar_select %p202, %s198, 0
        %s204 = smul.addr %s203, 8
        %s205 = smul.addr %s204, 2
        %s206 = scalar_lea.vmem %s1, %s205
        %s207 = ssub.s32 1, %s21
        %s208 = smul.u32 %s207, %s22
        %s209 = smul.u32 4, %s208
        %s210 = ssub.s32 1, %s209
        %s211 = smul.u32 32, %s210
        %s212 = smul.u32 %s211, 8
        %s213 = smul.u32 %s21, %s22
        %s214 = smul.u32 4, %s213
        %s215 = ssub.s32 1, %s214
        %s216 = smul.u32 32, %s215
        %s217 = smul.u32 %s216, 8
        %p218 = scmp.eq.s32.totalorder %s21, 0
        %p219 = scmp.eq.s32.totalorder %s22, 0
        %p220 = pnand %p218, %p219
        %p221 = pneg %p220
        // Predicated region
        $region29: #{ema_norm_forward.1} parent=27 // pred_check
          _
        $region30: #{ema_norm_forward.1} parent=27 // pred_check_branch
          %223 = sbr.rel (%p220) target = $region32
        $region31: #{ema_norm_forward.1} parent=27 // pred_region
          %224 = vst [vmem:[#allocation3] sm:$0xff] 0.0
          %225 = vst [vmem:[#allocation3 + $0x8] sm:$0xff] 0.0
          %226 = vst [vmem:[#allocation3 + $0x10] sm:$0xff] 0.0
          %227 = vst [vmem:[#allocation3 + $0x18] sm:$0xff] 0.0
          %228 = vst [vmem:[#allocation3 + $0x20] sm:$0xff] 0.0
          %229 = vst [vmem:[#allocation3 + $0x28] sm:$0xff] 0.0
          %230 = vst [vmem:[#allocation3 + $0x30] sm:$0xff] 0.0
          %231 = vst [vmem:[#allocation3 + $0x38] sm:$0xff] 0.0
        $region32: #{ema_norm_forward.1} parent=27 // pred_fallthru
          _
        // Predicated region
        $region33: #{ema_norm_forward.1} parent=27 // pred_check
          %p232 = pneg %p218
        $region34: #{ema_norm_forward.1} parent=27 // pred_check_branch
          %234 = sbr.rel (%p232) target = $region36
        $region35: #{ema_norm_forward.1} parent=27 // pred_region
          %v235 = vld [vmem:[%s206] sm:$0xff]
          %v236 = vld [vmem:[%s206 + $0x8] sm:$0xff]
          %v237 = vld [vmem:[%s206 + $0x10] sm:$0xff]
          %v238 = vld [vmem:[%s206 + $0x18] sm:$0xff]
          %v239 = vld [vmem:[%s206 + $0x20] sm:$0xff]
          %v240 = vld [vmem:[%s206 + $0x28] sm:$0xff]
          %v241 = vld [vmem:[%s206 + $0x30] sm:$0xff]
          %v242 = vld [vmem:[%s206 + $0x38] sm:$0xff]
          %v243 = vmul.f32 %v235, %v235
          %v244 = vmul.f32 %v236, %v236
          %v245 = vmul.f32 %v237, %v237
          %v246 = vmul.f32 %v238, %v238
          %v247 = vmul.f32 %v239, %v239
          %v248 = vmul.f32 %v240, %v240
          %v249 = vmul.f32 %v241, %v241
          %v250 = vmul.f32 %v242, %v242
          %s251 = smul.u32 %s22, 8
          %v252 = vlaneseq
          %v253 = vshrl.u32 %v252, 7
          %v254 = vstv %s251
          %v255 = vadd.s32 %v254, %v253
          %vm256 = vcmp.lt.s32.totalorder %v255, 2
          %v265 = vcombine.low %v243, %v245
          %v266 = vcombine.high %v243, %v245
          %v267 = vcombine.low %v247, %v249
          %v268 = vcombine.high %v247, %v249
          %v270 = vunpack.c.l.s4 1983009808
          %v271 = vunpack.c.0.s8 %v270
          %v272 = vlaneseq
          %v273 = vshrl.u32 %v272, 7
          %v274 = vsub.s32 %v271, %v273
          %v275 = vrot.slane %v265, %v274
          %v277 = vunpack.c.l.s4 1983009808
          %v278 = vunpack.c.0.s8 %v277
          %v279 = vlaneseq
          %v280 = vshrl.u32 %v279, 7
          %v281 = vsub.s32 %v278, %v280
          %v282 = vrot.slane %v266, %v281
          %v284 = vunpack.c.l.s4 1983009808
          %v285 = vunpack.c.0.s8 %v284
          %v286 = vlaneseq
          %v287 = vshrl.u32 %v286, 7
          %v288 = vsub.s32 %v285, %v287
          %v289 = vrot.slane %v267, %v288
          %v291 = vunpack.c.l.s4 1983009808
          %v292 = vunpack.c.0.s8 %v291
          %v293 = vlaneseq
          %v294 = vshrl.u32 %v293, 7
          %v295 = vsub.s32 %v292, %v294
          %v296 = vrot.slane %v268, %v295
          %v297 = vcombine.low %v275, %v289
          %v298 = vcombine.high %v275, %v289
          %v299 = vcombine.low %v282, %v296
          %v300 = vcombine.high %v282, %v296
          %v301 = vcombine.low %v244, %v246
          %v302 = vcombine.high %v244, %v246
          %v303 = vcombine.low %v248, %v250
          %v304 = vcombine.high %v248, %v250
          %v306 = vunpack.c.l.s4 1983009808
          %v307 = vunpack.c.0.s8 %v306
          %v308 = vlaneseq
          %v309 = vshrl.u32 %v308, 7
          %v310 = vsub.s32 %v307, %v309
          %v311 = vrot.slane %v301, %v310
          %v313 = vunpack.c.l.s4 1983009808
          %v314 = vunpack.c.0.s8 %v313
          %v315 = vlaneseq
          %v316 = vshrl.u32 %v315, 7
          %v317 = vsub.s32 %v314, %v316
          %v318 = vrot.slane %v302, %v317
          %v320 = vunpack.c.l.s4 1983009808
          %v321 = vunpack.c.0.s8 %v320
          %v322 = vlaneseq
          %v323 = vshrl.u32 %v322, 7
          %v324 = vsub.s32 %v321, %v323
          %v325 = vrot.slane %v303, %v324
          %v327 = vunpack.c.l.s4 1983009808
          %v328 = vunpack.c.0.s8 %v327
          %v329 = vlaneseq
          %v330 = vshrl.u32 %v329, 7
          %v331 = vsub.s32 %v328, %v330
          %v332 = vrot.slane %v304, %v331
          %v333 = vcombine.low %v311, %v325
          %v334 = vcombine.high %v311, %v325
          %v335 = vcombine.low %v318, %v332
          %v336 = vcombine.high %v318, %v332
          %v345 = vsel %vm256, %v297, 0.0
          %v346 = vsel %vm256, %v298, 0.0
          %v347 = vsel %vm256, %v299, 0.0
          %v348 = vsel %vm256, %v300, 0.0
          %v349 = vsel %vm256, %v333, 0.0
          %v350 = vsel %vm256, %v334, 0.0
          %v351 = vsel %vm256, %v335, 0.0
          %v352 = vsel %vm256, %v336, 0.0
          %v353 = vld [vmem:[#allocation3] sm:$0xff]
          %v354 = vld [vmem:[#allocation3 + $0x8] sm:$0xff]
          %v355 = vld [vmem:[#allocation3 + $0x10] sm:$0xff]
          %v356 = vld [vmem:[#allocation3 + $0x18] sm:$0xff]
          %v357 = vld [vmem:[#allocation3 + $0x20] sm:$0xff]
          %v358 = vld [vmem:[#allocation3 + $0x28] sm:$0xff]
          %v359 = vld [vmem:[#allocation3 + $0x30] sm:$0xff]
          %v360 = vld [vmem:[#allocation3 + $0x38] sm:$0xff]
          %v361 = vadd.f32 %v345, 0.0
          %v362 = vadd.f32 %v346, 0.0
          %v363 = vadd.f32 %v347, 0.0
          %v364 = vadd.f32 %v348, 0.0
          %v365 = vadd.f32 %v349, 0.0
          %v366 = vadd.f32 %v350, 0.0
          %v367 = vadd.f32 %v351, 0.0
          %v368 = vadd.f32 %v352, 0.0
          %v369 = vadd.f32 %v353, %v361
          %v370 = vadd.f32 %v354, %v362
          %v371 = vadd.f32 %v355, %v363
          %v372 = vadd.f32 %v356, %v364
          %v373 = vadd.f32 %v357, %v365
          %v374 = vadd.f32 %v358, %v366
          %v375 = vadd.f32 %v359, %v367
          %v376 = vadd.f32 %v360, %v368
          %377 = vst [vmem:[#allocation3] sm:$0xff] %v369
          %378 = vst [vmem:[#allocation3 + $0x8] sm:$0xff] %v370
          %379 = vst [vmem:[#allocation3 + $0x10] sm:$0xff] %v371
          %380 = vst [vmem:[#allocation3 + $0x18] sm:$0xff] %v372
          %381 = vst [vmem:[#allocation3 + $0x20] sm:$0xff] %v373
          %382 = vst [vmem:[#allocation3 + $0x28] sm:$0xff] %v374
          %383 = vst [vmem:[#allocation3 + $0x30] sm:$0xff] %v375
          %384 = vst [vmem:[#allocation3 + $0x38] sm:$0xff] %v376
          %v385 = vld [vmem:[%s206] sm:$0xff]
          %v386 = vld [vmem:[%s206 + $0x8] sm:$0xff]
          %v387 = vld [vmem:[%s206 + $0x10] sm:$0xff]
          %v388 = vld [vmem:[%s206 + $0x18] sm:$0xff]
          %v389 = vld [vmem:[%s206 + $0x20] sm:$0xff]
          %v390 = vld [vmem:[%s206 + $0x28] sm:$0xff]
          %v391 = vld [vmem:[%s206 + $0x30] sm:$0xff]
          %v392 = vld [vmem:[%s206 + $0x38] sm:$0xff]
          %v401 = vcombine.low %v385, %v387
          %v402 = vcombine.high %v385, %v387
          %v403 = vcombine.low %v389, %v391
          %v404 = vcombine.high %v389, %v391
          %v406 = vunpack.c.l.s4 1983009808
          %v407 = vunpack.c.0.s8 %v406
          %v408 = vlaneseq
          %v409 = vshrl.u32 %v408, 7
          %v410 = vsub.s32 %v407, %v409
          %v411 = vrot.slane %v401, %v410
          %v413 = vunpack.c.l.s4 1983009808
          %v414 = vunpack.c.0.s8 %v413
          %v415 = vlaneseq
          %v416 = vshrl.u32 %v415, 7
          %v417 = vsub.s32 %v414, %v416
          %v418 = vrot.slane %v402, %v417
          %v420 = vunpack.c.l.s4 1983009808
          %v421 = vunpack.c.0.s8 %v420
          %v422 = vlaneseq
          %v423 = vshrl.u32 %v422, 7
          %v424 = vsub.s32 %v421, %v423
          %v425 = vrot.slane %v403, %v424
          %v427 = vunpack.c.l.s4 1983009808
          %v428 = vunpack.c.0.s8 %v427
          %v429 = vlaneseq
          %v430 = vshrl.u32 %v429, 7
          %v431 = vsub.s32 %v428, %v430
          %v432 = vrot.slane %v404, %v431
          %v433 = vcombine.low %v411, %v425
          %v434 = vcombine.high %v411, %v425
          %v435 = vcombine.low %v418, %v432
          %v436 = vcombine.high %v418, %v432
          %v437 = vcombine.low %v386, %v388
          %v438 = vcombine.high %v386, %v388
          %v439 = vcombine.low %v390, %v392
          %v440 = vcombine.high %v390, %v392
          %v442 = vunpack.c.l.s4 1983009808
          %v443 = vunpack.c.0.s8 %v442
          %v444 = vlaneseq
          %v445 = vshrl.u32 %v444, 7
          %v446 = vsub.s32 %v443, %v445
          %v447 = vrot.slane %v437, %v446
          %v449 = vunpack.c.l.s4 1983009808
          %v450 = vunpack.c.0.s8 %v449
          %v451 = vlaneseq
          %v452 = vshrl.u32 %v451, 7
          %v453 = vsub.s32 %v450, %v452
          %v454 = vrot.slane %v438, %v453
          %v456 = vunpack.c.l.s4 1983009808
          %v457 = vunpack.c.0.s8 %v456
          %v458 = vlaneseq
          %v459 = vshrl.u32 %v458, 7
          %v460 = vsub.s32 %v457, %v459
          %v461 = vrot.slane %v439, %v460
          %v463 = vunpack.c.l.s4 1983009808
          %v464 = vunpack.c.0.s8 %v463
          %v465 = vlaneseq
          %v466 = vshrl.u32 %v465, 7
          %v467 = vsub.s32 %v464, %v466
          %v468 = vrot.slane %v440, %v467
          %v469 = vcombine.low %v447, %v461
          %v470 = vcombine.high %v447, %v461
          %v471 = vcombine.low %v454, %v468
          %v472 = vcombine.high %v454, %v468
          %s481 = sshra.s32 %s251, 3
          %s482 = sand.u32 %s251, 7
          %s483 = smul.u32 %s481, 8
          %s484 = smul.addr %s483, 8
          %s485 = scalar_lea.vmem [#allocation2], %s484
          %486 = vst [vmem:[%s485] sm:$0xff] %v433
          %487 = vst [vmem:[%s485 + $0x8] sm:$0xff] %v434
          %488 = vst [vmem:[%s485 + $0x10] sm:$0xff] %v435
          %489 = vst [vmem:[%s485 + $0x18] sm:$0xff] %v436
          %490 = vst [vmem:[%s485 + $0x20] sm:$0xff] %v469
          %491 = vst [vmem:[%s485 + $0x28] sm:$0xff] %v470
          %492 = vst [vmem:[%s485 + $0x30] sm:$0xff] %v471
          %493 = vst [vmem:[%s485 + $0x38] sm:$0xff] %v472
          %s494 = sld [smem:[#allocation4]]
          %s495 = scalar_lea.smem [#allocation6], 0
          %496 = sst [smem:[%s495]] %s494
        $region36: #{ema_norm_forward.1} parent=27 // pred_fallthru
          _
        %p497 = scmp.eq.s32.totalorder %s21, 1
        // Predicated region
        $region37: #{ema_norm_forward.1} parent=27 // pred_check
          %p498 = pneg %p497
        $region38: #{ema_norm_forward.1} parent=27 // pred_check_branch
          %500 = sbr.rel (%p498) target = $region40
        $region39: #{ema_norm_forward.1} parent=27 // pred_region
          %v501 = vld [vmem:[#allocation3] sm:$0xff]
          %v502 = vld [vmem:[#allocation3 + $0x8] sm:$0xff]
          %v503 = vld [vmem:[#allocation3 + $0x10] sm:$0xff]
          %v504 = vld [vmem:[#allocation3 + $0x18] sm:$0xff]
          %v505 = vld [vmem:[#allocation3 + $0x20] sm:$0xff]
          %v506 = vld [vmem:[#allocation3 + $0x28] sm:$0xff]
          %v507 = vld [vmem:[#allocation3 + $0x30] sm:$0xff]
          %v508 = vld [vmem:[#allocation3 + $0x38] sm:$0xff]
          %v509 = vadd.f32 %v501, %v502
          %v510 = vadd.f32 %v509, %v503
          %v511 = vadd.f32 %v510, %v504
          %v512 = vadd.f32 %v511, %v505
          %v513 = vadd.f32 %v512, %v506
          %v514 = vadd.f32 %v513, %v507
          %v515 = vadd.f32 %v514, %v508
          %516 = vadd.xlane.f32.xlu0 %v515
          %v517 = vpop.xlane.xlu0 %516
          %v518 = vrot.slane %v517, 4
          %v519 = vadd.f32 %v517, %v518
          %v520 = vrot.slane %v519, 2
          %v521 = vadd.f32 %v519, %v520
          %v522 = vrot.slane %v521, 1
          %v523 = vadd.f32 %v521, %v522
          %s524 = vtos %v523
          %s525 = smul.f32 %s524, 0.00048828125
          %s526 = sld [smem:[#allocation4]]
          %s527 = ssub.f32 %s526, %s525
          %s528 = smul.f32 %s527, 0.999
          %s529 = sadd.f32 %s525, %s528
          %p530 = scmp.ne.f32.partialorder %s525, %s525
          %s531 = scalar_select %p530, %s526, %s529
          %s532 = sadd.f32 %s531, 1e-05
          %v533 = vstv %s532
          %v534 = vrsqrt.pop %v533
          %s535 = vtos %v534
          %s536 = smul.u32 %s22, 8
          %s537 = sshra.s32 %s536, 3
          %s538 = sand.u32 %s536, 7
          %s539 = smul.u32 %s537, 8
          %s540 = smul.addr %s539, 8
          %s541 = scalar_lea.vmem [#allocation2], %s540
          %v542 = vld [vmem:[%s541] sm:$0xff]
          %v543 = vld [vmem:[%s541 + $0x8] sm:$0xff]
          %v544 = vld [vmem:[%s541 + $0x10] sm:$0xff]
          %v545 = vld [vmem:[%s541 + $0x18] sm:$0xff]
          %v546 = vld [vmem:[%s541 + $0x20] sm:$0xff]
          %v547 = vld [vmem:[%s541 + $0x28] sm:$0xff]
          %v548 = vld [vmem:[%s541 + $0x30] sm:$0xff]
          %v549 = vld [vmem:[%s541 + $0x38] sm:$0xff]
          %v550 = vstv %s535
          %v551 = vmul.f32 %v542, %v550
          %v552 = vmul.f32 %v543, %v550
          %v553 = vmul.f32 %v544, %v550
          %v554 = vmul.f32 %v545, %v550
          %v555 = vmul.f32 %v546, %v550
          %v556 = vmul.f32 %v547, %v550
          %v557 = vmul.f32 %v548, %v550
          %v558 = vmul.f32 %v549, %v550
          %v567 = vcombine.low %v551, %v552
          %v568 = vcombine.high %v551, %v552
          %v569 = vcombine.low %v553, %v554
          %v570 = vcombine.high %v553, %v554
          %v572 = vunpack.c.l.s4 1983009808
          %v573 = vunpack.c.0.s8 %v572
          %v574 = vlaneseq
          %v575 = vshrl.u32 %v574, 7
          %v576 = vsub.s32 %v573, %v575
          %v577 = vrot.slane %v567, %v576
          %v579 = vunpack.c.l.s4 1983009808
          %v580 = vunpack.c.0.s8 %v579
          %v581 = vlaneseq
          %v582 = vshrl.u32 %v581, 7
          %v583 = vsub.s32 %v580, %v582
          %v584 = vrot.slane %v568, %v583
          %v586 = vunpack.c.l.s4 1983009808
          %v587 = vunpack.c.0.s8 %v586
          %v588 = vlaneseq
          %v589 = vshrl.u32 %v588, 7
          %v590 = vsub.s32 %v587, %v589
          %v591 = vrot.slane %v569, %v590
          %v593 = vunpack.c.l.s4 1983009808
          %v594 = vunpack.c.0.s8 %v593
          %v595 = vlaneseq
          %v596 = vshrl.u32 %v595, 7
          %v597 = vsub.s32 %v594, %v596
          %v598 = vrot.slane %v570, %v597
          %v599 = vcombine.low %v577, %v591
          %v600 = vcombine.high %v577, %v591
          %v601 = vcombine.low %v584, %v598
          %v602 = vcombine.high %v584, %v598
          %v603 = vcombine.low %v555, %v556
          %v604 = vcombine.high %v555, %v556
          %v605 = vcombine.low %v557, %v558
          %v606 = vcombine.high %v557, %v558
          %v608 = vunpack.c.l.s4 1983009808
          %v609 = vunpack.c.0.s8 %v608
          %v610 = vlaneseq
          %v611 = vshrl.u32 %v610, 7
          %v612 = vsub.s32 %v609, %v611
          %v613 = vrot.slane %v603, %v612
          %v615 = vunpack.c.l.s4 1983009808
          %v616 = vunpack.c.0.s8 %v615
          %v617 = vlaneseq
          %v618 = vshrl.u32 %v617, 7
          %v619 = vsub.s32 %v616, %v618
          %v620 = vrot.slane %v604, %v619
          %v622 = vunpack.c.l.s4 1983009808
          %v623 = vunpack.c.0.s8 %v622
          %v624 = vlaneseq
          %v625 = vshrl.u32 %v624, 7
          %v626 = vsub.s32 %v623, %v625
          %v627 = vrot.slane %v605, %v626
          %v629 = vunpack.c.l.s4 1983009808
          %v630 = vunpack.c.0.s8 %v629
          %v631 = vlaneseq
          %v632 = vshrl.u32 %v631, 7
          %v633 = vsub.s32 %v630, %v632
          %v634 = vrot.slane %v606, %v633
          %v635 = vcombine.low %v613, %v627
          %v636 = vcombine.high %v613, %v627
          %v637 = vcombine.low %v620, %v634
          %v638 = vcombine.high %v620, %v634
          %647 = vst [vmem:[%s193] sm:$0xff] %v599
          %648 = vst [vmem:[%s193 + $0x8] sm:$0xff] %v635
          %649 = vst [vmem:[%s193 + $0x10] sm:$0xff] %v600
          %650 = vst [vmem:[%s193 + $0x18] sm:$0xff] %v636
          %651 = vst [vmem:[%s193 + $0x20] sm:$0xff] %v601
          %652 = vst [vmem:[%s193 + $0x28] sm:$0xff] %v637
          %653 = vst [vmem:[%s193 + $0x30] sm:$0xff] %v602
          %654 = vst [vmem:[%s193 + $0x38] sm:$0xff] %v638
          %s655 = scalar_lea.smem [#allocation6], 0
          %656 = sst [smem:[%s655]] %s531
        $region40: #{ema_norm_forward.1} parent=27 // pred_fallthru
          _
        %s657 = sand.u32 %s90, 1
        %s658 = sand.u32 %s90, 1
        %s659 = smul.addr %s658, 64
        %s660 = scalar_lea.vmem [#allocation5], %s659
        // Predicated region
        $region41: #{ema_norm_forward.1} parent=27 // pred_check
          %p661 = pneg %p100
        $region42: #{ema_norm_forward.1} parent=27 // pred_check_branch
          %663 = sbr.rel (%p661) target = $region44
        $region43: #{ema_norm_forward.1} parent=27 // pred_region
          %s664 = smul.u32 %s21, %s22
          %s665 = smul.u32 4, %s664
          %s666 = ssub.s32 1, %s665
          %s667 = smul.u32 32, %s666
          %s668 = smul.u32 %s667, 8
          %p669 = scmp.ne.s32.totalorder 0, %s668
          %s670 = smul.addr %s665, 8
          %s671 = smul.addr %s670, 2
          %s672 = scalar_lea.vmem %s2, %s671
          // Predicated region
          $region45: #{ema_norm_forward.1} parent=43 // pred_check
            %p673 = pneg %p669
          $region46: #{ema_norm_forward.1} parent=43 // pred_check_branch
            %675 = sbr.rel (%p673) target = $region48
          $region47: #{ema_norm_forward.1} parent=43 // pred_region
            // Predicated region
            $region49: #{ema_norm_forward.1} parent=47 // pred_check
              _
            $region50: #{ema_norm_forward.1} parent=47 // pred_check_branch
              %677 = sbr.rel (0) target = $region52
            $region51: #{ema_norm_forward.1} parent=47 // pred_region
              // While loop
              $region53: #{ema_norm_forward.1} parent=51 // loop_pre_header
                _
              $region54: #{ema_norm_forward.1} parent=51 // loop_header
                %s679 = sphi 0, %s681
                %p680 = scmp.ge.s32.totalorder %s679, %s666
                %s684 = sphi 0, %s693
                %s685 = sphi %s660, %s696
                %s686 = sphi %s672, %s697
              $region55: #{ema_norm_forward.1} parent=51 // loop_header_branch
                %683 = sbr.rel (%p680) target = $region59
              $region56: #{ema_norm_forward.1} parent=51 // loop_body
                %v687 = vld [vmem:[%s685] sm:$0xff]
                %688 = vst [vmem:[%s686] sm:$0xff] %v687
                %v689 = vld [vmem:[%s685 + $0x8] sm:$0xff]
                %690 = vst [vmem:[%s686 + $0x8] sm:$0xff] %v689
                %s691 = sadd.s32 1, %s684
                %p692 = scmp.ge.s32.totalorder %s691, %s666
                %s693 = scalar_select %p692, 0, %s691
                %s694 = smul.u32 %s693, 16
                %s695 = smul.u32 %s693, 16
                %s696 = scalar_lea.vmem %s660, %s694 [#allocation5]
                %s697 = scalar_lea.vmem %s672, %s695
              $region57: #{ema_norm_forward.1} parent=51 // loop_footer
                %s681 = sadd.s32 %s679, 1
              $region58: #{ema_norm_forward.1} parent=51 // loop_footer_branch
                %678 = sbr.rel target = $region54
              $region59: #{ema_norm_forward.1} parent=51 // loop_exit
                _
            $region52: #{ema_norm_forward.1} parent=47 // pred_fallthru
              _
            // Predicated region
            $region60: #{ema_norm_forward.1} parent=47 // pred_check
              _
            $region61: #{ema_norm_forward.1} parent=47 // pred_check_branch
              %699 = sbr.rel target = $region63
            $region62: #{ema_norm_forward.1} parent=47 // pred_region
              _
            $region63: #{ema_norm_forward.1} parent=47 // pred_fallthru
              _
          $region48: #{ema_norm_forward.1} parent=43 // pred_fallthru
            _
          %700 = vnop
        $region44: #{ema_norm_forward.1} parent=27 // pred_fallthru
          _
        // Predicated region
        $region64: #{ema_norm_forward.1} parent=27 // pred_check
          %p701 = pneg %p121
        $region65: #{ema_norm_forward.1} parent=27 // pred_check_branch
          %703 = sbr.rel (%p701) target = $region67
        $region66: #{ema_norm_forward.1} parent=27 // pred_region
          %s705 = ssub.s32 16, 16
          %706 = vsyncadd [#allocation7], %s705
          %709 = dma.smem_to_hbm [#allocation6], 16, %s3, [#allocation7]
        $region67: #{ema_norm_forward.1} parent=27 // pred_fallthru
          _
        // Predicated region
        $region68: #{ema_norm_forward.1} parent=27 // pred_check
          %p710 = pneg %p121
        $region69: #{ema_norm_forward.1} parent=27 // pred_check_branch
          %712 = sbr.rel (%p710) target = $region71
        $region70: #{ema_norm_forward.1} parent=27 // pred_region
          %713 = dma.done [#allocation7], 16
        $region71: #{ema_norm_forward.1} parent=27 // pred_fallthru
          _
        %714 = sfence
      $region28: #{ema_norm_forward.1} parent=5 // pred_fallthru
        _
      %p715 = scmp.le.s32.totalorder 2, %s12
      // Predicated region
      $region72: #{ema_norm_forward.1} parent=5 // pred_check
        %p716 = pneg %p715
      $region73: #{ema_norm_forward.1} parent=5 // pred_check_branch
        %718 = sbr.rel (%p716) target = $region75
      $region74: #{ema_norm_forward.1} parent=5 // pred_region
        %s719 = ssub.s32 %s12, 2
        // Predicated region
        $region76: #{ema_norm_forward.1} parent=74 // pred_check
          %p720 = pneg %p106
        $region77: #{ema_norm_forward.1} parent=74 // pred_check_branch
          %722 = sbr.rel (%p720) target = $region79
        $region78: #{ema_norm_forward.1} parent=74 // pred_region
          %s723 = sand.u32 %s91, 1
          %s724 = sand.u32 %s91, 1
          %s725 = smul.addr %s724, 64
          %s726 = scalar_lea.vmem [#allocation5], %s725
        $region79: #{ema_norm_forward.1} parent=74 // pred_fallthru
          _
      $region75: #{ema_norm_forward.1} parent=5 // pred_fallthru
        _
    $region6: #{ema_norm_forward.1} parent=1 // loop_footer
      %s16 = sadd.s32 1, %s12
    $region7: #{ema_norm_forward.1} parent=1 // loop_footer_branch
      %11 = sbr.rel target = $region3
    $region8: #{ema_norm_forward.1} parent=1 // loop_exit
      _
    %727 = vsyncpa [#allocation7], 1
    %s728 = scalar_lea.sflag [#allocation7], 1
    %729 = vsyncpa %s728, 1

</llo_original>
